<compile_context>
chip_gen: v5e
topology: v5e:2x2
jax: 0.10.0
libtpu: 0.0.40
codegen_flags: <defaults>
</compile_context>

<pallas_src>
import functools

import jax
import jax.numpy as jnp
from jax.experimental import pallas as pl
from jax.experimental.pallas import tpu as pltpu


# Explicit scoped-VMEM limit: safe on v7x (64 MiB physical) and raises the 16/32 MiB
# defaults on v5e / v6e so large pixel tiles fit without compiler spilling.
_VMEM_LIMIT_BYTES = 48 * 1024 * 1024
# Bytes reserved for the double-buffered input + output blocks when choosing tile_p.
_VMEM_STREAM_BUDGET = 32 * 1024 * 1024


# ---------------------------------------------------------------------------
# Glue: bilinear interpolation with align_corners=True (matches F.interpolate),
# expressed as two separable linear-interp matrices.
# ---------------------------------------------------------------------------
def _interp_matrix(s_in: int, s_out: int) -> jnp.ndarray:
    if s_out == 1:
        coords = jnp.zeros((1,), dtype=jnp.float32)
    else:
        coords = jnp.arange(s_out, dtype=jnp.float32) * ((s_in - 1) / (s_out - 1))
    lo = jnp.floor(coords).astype(jnp.int32)
    hi = jnp.minimum(lo + 1, s_in - 1)
    frac = coords - lo.astype(jnp.float32)
    rows = jnp.arange(s_out)
    m = jnp.zeros((s_out, s_in), dtype=jnp.float32)
    m = m.at[rows, lo].add(1.0 - frac)
    m = m.at[rows, hi].add(frac)
    return m


def _bilinear_resize(x: jnp.ndarray, out_h: int, out_w: int) -> jnp.ndarray:
    """x: (N, C, h, w) -> (N, C, out_h, out_w), align_corners=True.

    Computed in f32, materialized back in x's dtype (streaming dtype)."""
    dt = x.dtype
    _, _, h, w = x.shape
    mh = _interp_matrix(h, out_h)
    mw = _interp_matrix(w, out_w)
    y = jnp.einsum("Hh,nchw->ncHw", mh, x.astype(jnp.float32))
    y = jnp.einsum("Ww,ncHw->ncHW", mw, y)
    return y.astype(dt)


def _maybe_resize(x: jnp.ndarray, out_h: int, out_w: int) -> jnp.ndarray:
    """Skip the interpolation (and its HBM round trip) when it is the identity."""
    _, _, h, w = x.shape
    if (h, w) == (out_h, out_w):
        return x
    # TODO(synk): fuse this separable bilinear resize into the Pallas kernel (two tiny
    #             extra matmuls per tile) to avoid materializing the upsampled tensor
    #             in HBM; it is skipped entirely for the DA_vgg_v29 identity default.
    return _bilinear_resize(x, out_h, out_w)


# ---------------------------------------------------------------------------
# Tile selection: lane-dense pixel tiles, as big as the VMEM budget allows.
# ---------------------------------------------------------------------------
def _choose_tile_p(*, hw: int, n: int, in_bytes_per_px: int, out_bytes_per_px: int,
                   tile_p_max: int) -> int:
    hw_pad = pl.cdiv(hw, 128) * 128
    # Double-buffered input + output blocks per grid step.
    per_pixel = 2 * (in_bytes_per_px + out_bytes_per_px)
    vmem_cap = max(128, (_VMEM_STREAM_BUDGET // per_pixel) // 128 * 128)
    tile_p = max(128, (min(tile_p_max, hw_pad, vmem_cap) // 128) * 128)
    # Keep at least two grid steps so both v7x TensorCores get work.
    if n * pl.cdiv(hw, tile_p) < 2 and hw_pad >= 256:
        tile_p = max(128, pl.cdiv(pl.cdiv(hw_pad, 2), 128) * 128)
    return tile_p


# ---------------------------------------------------------------------------
# Pallas kernel.  Per pixel tile (lane axis, tile_p wide):
#   K == 1 (use_map=False):  y = W_eff @ f + b            with W_eff = W_0 + 2*W_1
#   K >= 2:                  z = W_stack @ f, W_stack = [W_sum; W_1; ...; W_K]
#                            y = z0 + sum_i seg_i * z_{i+1} + b
# which is algebraically identical to Conv1x1(concat(f, seg_0*f+f, ..., seg_{K-1}*f+f)).
# ---------------------------------------------------------------------------
def _fbem_kernel(*refs, num_classes: int, channels: int, use_map: bool):
    if use_map:
        map_ref, feat_ref, w_ref, b_ref, out_ref = refs
    else:
        feat_ref, w_ref, b_ref, out_ref = refs

    c = channels
    # Upcast after load: streaming may be bf16 (halves HBM bytes), but all elementwise
    # math runs in f32 in-register (v5e's VPU has no bf16 ALUs); MXU accumulates f32.
    f = feat_ref[0].astype(jnp.float32)                                 # (C, TP)
    z = jnp.dot(w_ref[...], f, preferred_element_type=jnp.float32)      # (R, TP)

    if not use_map:
        # num_classes == 1: softmax over a single channel is exactly 1 everywhere,
        # so the wrapper already folded everything into a single (C, C) weight.
        y = z
    elif num_classes == 2:
        m = map_ref[0].astype(jnp.float32)                               # (2, TP)
        # 2-way softmax == sigmoid; z0 + z1 + fore*(z2 - z1) saves a multiply.
        fore = jax.nn.sigmoid(m[1:2, :] - m[0:1, :])                     # (1, TP)
        z0 = z[0:c]
        z1 = z[c:2 * c]
        z2 = z[2 * c:3 * c]
        y = z0 + z1 + fore * (z2 - z1)
    else:
        m = map_ref[0].astype(jnp.float32)                               # (K, TP)
        mmax = jnp.max(m, axis=0, keepdims=True)
        e = jnp.exp(m - mmax)
        seg = e / jnp.sum(e, axis=0, keepdims=True)
        y = z[0:c]
        for i in range(num_classes):
            y = y + seg[i:i + 1, :] * z[(i + 1) * c:(i + 2) * c]

    out_ref[0] = (y + b_ref[...]).astype(out_ref.dtype)


def fbem_v6_forward(map_x, feature, size, params, num_classes: int, *,
                    tile_p_max: int = 32768, out_dtype=None):
    """Pallas-backed FBEM_v6.forward(map, feature, size)."""
    c = params["conv_b"].shape[0]
    n, c_in, h_f, w_f = feature.shape
    assert c_in == c
    out_h, out_w = size
    k = num_classes
    use_map = k >= 2
    out_dtype = feature.dtype if out_dtype is None else out_dtype

    w = params["conv_w"].astype(jnp.float32)           # (C, (K+1)*C) 1x1 conv kernel
    bias = params["conv_b"].astype(jnp.float32).reshape(c, 1)

    # Split the (C, (K+1)C) conv weight into its (C, C) blocks and pre-fold the
    # "+ feature" residuals:  y = (sum_j W_j) @ f + sum_i seg_i * (W_{i+1} @ f).
    blocks = [w[:, j * c:(j + 1) * c] for j in range(k + 1)]
    if use_map:
        w_sum = functools.reduce(lambda a, b_: a + b_, blocks)
        w_stack = jnp.concatenate([w_sum] + blocks[1:], axis=0)          # ((K+1)C, C)
    else:
        # K == 1: seg == 1 exactly, so y = (W_0 + 2*W_1) @ f -> single (C, C) matmul.
        w_stack = blocks[0] + 2.0 * blocks[1]                            # (C, C)

    # Inputs stream in their own dtype; identity resize => zero wrapper-side copies.
    feat_up = _maybe_resize(feature, out_h, out_w)                       # (N, C, H, W)
    hw = out_h * out_w
    feat_r = feat_up.reshape(n, c, hw)

    in_arrays, in_specs = [], []
    map_bytes = 0
    if use_map:
        map_up = _maybe_resize(map_x, out_h, out_w)                      # (N, K, H, W)
        in_arrays.append(map_up.reshape(n, k, hw))
        map_bytes = jnp.dtype(map_up.dtype).itemsize

    feat_bytes = jnp.dtype(feat_r.dtype).itemsize
    out_bytes = jnp.dtype(out_dtype).itemsize
    tile_p = _choose_tile_p(
        hw=hw, n=n,
        in_bytes_per_px=c * feat_bytes + k * map_bytes,
        out_bytes_per_px=c * out_bytes,
        tile_p_max=tile_p_max)
    n_tiles = pl.cdiv(hw, tile_p)        # ragged last tile handled by masked load/store

    if use_map:
        in_specs.append(pl.BlockSpec((1, k, tile_p), lambda b_, p: (b_, 0, p)))
    in_arrays += [feat_r, w_stack, bias]
    in_specs += [
        pl.BlockSpec((1, c, tile_p), lambda b_, p: (b_, 0, p)),          # feature tile
        pl.BlockSpec(w_stack.shape, lambda b_, p: (0, 0)),               # stacked weight
        pl.BlockSpec((c, 1), lambda b_, p: (0, 0)),                      # bias
    ]
    # TODO(synk): if xprof still shows exposed DMA on v7x with large tiles, bump the
    #             feature/map specs to pipeline_mode=pl.Buffered(3) (and account for
    #             the extra buffer in the VMEM budget above).

    kernel = functools.partial(
        _fbem_kernel, num_classes=k, channels=c, use_map=use_map)

    # Advisory cost estimate: this kernel is HBM-bandwidth bound, not MXU bound.
    w_rows = w_stack.shape[0]
    flops = 2 * n * hw * w_rows * c + 6 * n * hw * c
    transcendentals = n * hw * k if use_map else 0
    bytes_accessed = (n * c * hw * feat_bytes
                      + (n * k * hw * map_bytes if use_map else 0)
                      + n * c * hw * out_bytes
                      + 4 * (w_rows * c + c))

    out_flat = pl.pallas_call(
        kernel,
        out_shape=jax.ShapeDtypeStruct((n, c, hw), out_dtype),
        grid_spec=pltpu.PrefetchScalarGridSpec(
            num_scalar_prefetch=0,
            grid=(n, n_tiles),
            in_specs=in_specs,
            out_specs=pl.BlockSpec((1, c, tile_p), lambda b_, p: (b_, 0, p)),
        ),
        compiler_params=pltpu.CompilerParams(
            dimension_semantics=("parallel", "parallel"),
            vmem_limit_bytes=_VMEM_LIMIT_BYTES),
        cost_estimate=pl.CostEstimate(
            flops=int(flops),
            transcendentals=int(transcendentals),
            bytes_accessed=int(bytes_accessed)),
    )(*in_arrays)

    out = out_flat.reshape(n, c, out_h, out_w)
    # Interpolate back to the original feature spatial size (identity -> skipped).
    return _maybe_resize(out, h_f, w_f)


# ---------------------------------------------------------------------------
# Pure-JAX reference (mirrors the PyTorch FBEM_v6.forward) for correctness.
# ---------------------------------------------------------------------------
def fbem_v6_reference(map_x, feature, size, params, num_classes: int):
    w = params["conv_w"].astype(jnp.float32)
    b = params["conv_b"].astype(jnp.float32)
    _, _, h_f, w_f = feature.shape
    out_h, out_w = size

    m = _maybe_resize(map_x.astype(jnp.float32), out_h, out_w)
    f = _maybe_resize(feature.astype(jnp.float32), out_h, out_w)
    seg = jax.nn.softmax(m, axis=1)
    cat = [f]
    for i in range(num_classes):
        cat.append(seg[:, i:i + 1] * f + f)
    x = jnp.concatenate(cat, axis=1)                                     # (N,(K+1)C,H,W)
    y = jnp.einsum("oc,nchw->nohw", w, x) + b[None, :, None, None]
    return _maybe_resize(y, h_f, w_f)


if __name__ == "__main__":
    key = jax.random.PRNGKey(0)

    N, C = 2, 8
    # (num_classes, map spatial, feature spatial, size, streaming dtype, atol, rtol).
    # DA_vgg_v29 uses K=1 with size == feature spatial size (identity resize, weight
    # folded to one (C,C) matmul); other configs exercise the sigmoid (K=2) and
    # general-softmax (K=3) paths, ragged tiles, and bf16 streaming.
    configs = [
        (1, (32, 32), (16, 16), (16, 16), jnp.float32, 1e-4, 1e-4),
        (2, (8, 8), (12, 12), (24, 24), jnp.float32, 1e-4, 1e-4),
        (3, (12, 12), (14, 14), (28, 28), jnp.float32, 1e-4, 1e-4),
        (1, (32, 32), (16, 16), (16, 16), jnp.bfloat16, 5e-2, 5e-2),
    ]

    for k, mhw, fhw, size, dt, atol, rtol in configs:
        key, k_map, k_feat, k_w, k_b = jax.random.split(key, 5)
        map_x = jax.random.normal(k_map, (N, k) + mhw, dtype=jnp.float32).astype(dt)
        feature = jax.random.normal(k_feat, (N, C) + fhw, dtype=jnp.float32).astype(dt)
        # Shapes from FBEM_v6.__init__: out = nn.Conv2d((K+1)*C, C, 1).
        params = {
            "conv_w": 0.1 * jax.random.normal(k_w, (C, (k + 1) * C), dtype=jnp.float32),
            "conv_b": 0.1 * jax.random.normal(k_b, (C,), dtype=jnp.float32),
        }

        out = jax.block_until_ready(fbem_v6_forward(map_x, feature, size, params, k))
        ref = jax.block_until_ready(
            fbem_v6_reference(map_x.astype(jnp.float32),
                              feature.astype(jnp.float32), size, params, k))

        assert out.shape == feature.shape, (out.shape, feature.shape)
        out_f32 = out.astype(jnp.float32)
        max_err = float(jnp.max(jnp.abs(out_f32 - ref)))
        assert jnp.allclose(out_f32, ref, atol=atol, rtol=rtol), (k, str(dt), max_err)

    print("KERNEL_OK")
</pallas_src>

<mosaic_0001>
module attributes {stable_mosaic.version = 11 : i64} {
  func.func @_fbem_kernel(%arg0: i32, %arg1: i32, %arg2: memref<1x8x256xf32, #tpu.memory_space<vmem>>, %arg3: memref<8x8xf32, #tpu.memory_space<vmem>>, %arg4: memref<8x1xf32, #tpu.memory_space<vmem>>, %arg5: memref<1x8x256xf32, #tpu.memory_space<vmem>>) attributes {dimension_semantics = [#tpu.dimension_semantics<parallel>, #tpu.dimension_semantics<parallel>], iteration_bounds = array<i64: 2, 1>, scalar_prefetch = 0 : i64, scratch_operands = 0 : i64, tpu.core_type = #tpu.core_type<tc>, window_params = [{transform_indices = @transform_0, window_bounds = array<i64: 1, 8, 256>}, {pipeline_mode = #tpu.pipeline_mode<synchronous>, transform_indices = @transform_1, window_bounds = array<i64: 8, 8>}, {pipeline_mode = #tpu.pipeline_mode<synchronous>, transform_indices = @transform_2, window_bounds = array<i64: 8, 1>}, {transform_indices = @transform_3, window_bounds = array<i64: 1, 8, 256>}]} {
    %c0 = arith.constant 0 : index
    %c0_0 = arith.constant 0 : index
    %c0_1 = arith.constant 0 : index
    %0 = vector.load %arg2[%c0, %c0_0, %c0_1] : memref<1x8x256xf32, #tpu.memory_space<vmem>>, vector<1x8x256xf32>
    %1 = vector.shape_cast %0 : vector<1x8x256xf32> to vector<8x256xf32>
    %c0_2 = arith.constant 0 : index
    %c0_3 = arith.constant 0 : index
    %2 = vector.load %arg3[%c0_2, %c0_3] : memref<8x8xf32, #tpu.memory_space<vmem>>, vector<8x8xf32>
    %cst = arith.constant dense<0.000000e+00> : vector<8x256xf32>
    %3 = tpu.matmul %2, %1, %cst {dimension_numbers = #tpu.dot_dimension_numbers<[1], [0], [0], [1], [0, 0, 1, 1], [], []>} : vector<8x8xf32>, vector<8x256xf32>, vector<8x256xf32> -> vector<8x256xf32>
    %c0_4 = arith.constant 0 : index
    %c0_5 = arith.constant 0 : index
    %4 = vector.load %arg4[%c0_4, %c0_5] : memref<8x1xf32, #tpu.memory_space<vmem>>, vector<8x1xf32>
    %5 = vector.broadcast %4 : vector<8x1xf32> to vector<8x256xf32>
    %6 = arith.addf %3, %5 : vector<8x256xf32>
    %c0_6 = arith.constant 0 : index
    %c0_7 = arith.constant 0 : index
    %c0_8 = arith.constant 0 : index
    %7 = vector.load %arg5[%c0_6, %c0_7, %c0_8] : memref<1x8x256xf32, #tpu.memory_space<vmem>>, vector<1x8x256xf32>
    %8 = vector.shape_cast %7 : vector<1x8x256xf32> to vector<8x256xf32>
    %9 = vector.shape_cast %6 : vector<8x256xf32> to vector<1x8x256xf32>
    tpu.vector_store %arg5[%c0_6, %c0_7, %c0_8], %9 {strides = array<i32>} : memref<1x8x256xf32, #tpu.memory_space<vmem>>, vector<1x8x256xf32>,
    return
  }
  func.func @transform_0(%arg0: i32, %arg1: i32) -> (i32, i32, i32) {
    %c0_i32 = arith.constant 0 : i32
    %c0_i32_0 = arith.constant 0 : i32
    return %arg0, %c0_i32, %arg1 : i32, i32, i32
  }
  func.func @transform_1(%arg0: i32, %arg1: i32) -> (i32, i32) {
    %c0_i32 = arith.constant 0 : i32
    %c0_i32_0 = arith.constant 0 : i32
    %c0_i32_1 = arith.constant 0 : i32
    return %c0_i32, %c0_i32_0 : i32, i32
  }
  func.func @transform_2(%arg0: i32, %arg1: i32) -> (i32, i32) {
    %c0_i32 = arith.constant 0 : i32
    %c0_i32_0 = arith.constant 0 : i32
    %c0_i32_1 = arith.constant 0 : i32
    return %c0_i32, %c0_i32_0 : i32, i32
  }
  func.func @transform_3(%arg0: i32, %arg1: i32) -> (i32, i32, i32) {
    %c0_i32 = arith.constant 0 : i32
    %c0_i32_0 = arith.constant 0 : i32
    return %arg0, %c0_i32, %arg1 : i32, i32, i32
  }
}

</mosaic_0001>

<llo_original>
// kernel: tpu_custom_call.1
$region0: #{tpu_custom_call.1}
  #allocation0 [shape = 'u32[]', space=smem, size = 0x4, offset = 0x4, fixed_abs, tag = 'smem constant byte address 0x4 - core index']
  #allocation1 [shape = 'u32[72,128]{1,0:T(1,128)}', space=vmem, size = 0x9000, scoped, tag = 'internal scratch']
  %s0 = inlined_call_operand.hbm [shape: f32[2,8,256], index: 0, kind: input, shape index: {}]
  %s1 = inlined_call_operand.vmem [shape: f32[8,8], index: 1, kind: input, shape index: {}]
  %s2 = inlined_call_operand.vmem [shape: f32[8,1], index: 2, kind: input, shape index: {}]
  %s3 = inlined_call_operand.hbm [shape: f32[2,8,256], index: 3, kind: output, shape index: {}]
  %s4 = sld [smem:[#allocation0]]
  $region49: #{tpu_custom_call.1} parent=0
    _
  %s6 = ssub.s32 1, %s4
  %s7 = scalar_select 0, %s6, %s4
  $region1: #{tpu_custom_call.1} parent=0
    #allocation2 [shape = 'u8[16384]{0}', space=vmem, size = 0x4000, scoped, tag = 'input window, operand 0']
    #allocation3 [shape = 's32[2]{0}', space=sflag, size = 0x8, scoped, tag = 'scoped memory for tpu_custom_call.1']
    #allocation4 [shape = 's32[2]{0}', space=sflag, size = 0x8, scoped, tag = 'scoped memory for tpu_custom_call.1']
    #allocation5 [shape = 'u8[16384]{0}', space=vmem, size = 0x4000, scoped, tag = 'output window, operand 0']
    %8 = vsyncpa [#allocation3], 0
    %s9 = scalar_lea.sflag [#allocation3], 1
    %10 = vsyncpa %s9, 0
    %11 = vsyncpa [#allocation4], 0
    %s12 = scalar_lea.sflag [#allocation4], 1
    %13 = vsyncpa %s12, 0
    loop: start=0, step=1, limit=4
    $region2: #{tpu_custom_call.1} parent=1 // loop_pre_header
      _
    $region3: #{tpu_custom_call.1} parent=1 // loop_header
      %s15 = sphi 0, %s19
      %p16 = scmp.ge.s32.totalorder %s15, 4
      %s22 = sphi 0, %s34
      %s23 = sphi 0, %s30
      %s24 = sphi 0, %s22
      %s25 = sphi 0, %s23
      %s26 = sphi 0, %s24
      %s27 = sphi 0, %s25
      %s39 = sphi 0, %s41
      %s42 = sphi 0, %s39
      %s43 = sphi 0, %s42
      %s59 = sphi 0, %s43
      %s63 = sphi 0, %s63
      %s65 = sphi 0, %s63
      %s66 = sphi 0, %s65
      %s80 = sphi 0, %s66
      %s84 = sphi 0, %s84
      %s86 = sphi 0, %s84
      %s87 = sphi 0, %s86
      %s101 = sphi 0, %s87
      %s109 = sphi 0, %s111
      %s112 = sphi 0, %s109
      %s113 = sphi 0, %s112
      %s129 = sphi 0, %s113
    $region4: #{tpu_custom_call.1} parent=1 // loop_header_branch
      %18 = sbr.rel (%p16) target = $region8
    $region5: #{tpu_custom_call.1} parent=1 // loop_body
      %s20 = ssub.s32 %s15, 1
      %s21 = ssub.s32 %s15, 2
      %s28 = sadd.s32 1, %s23
      %p29 = scmp.ge.s32.totalorder %s28, 1
      %s30 = scalar_select %p29, 0, %s28
      %s31 = sadd.s32 1, %s22
      %s32 = scalar_select %p29, %s31, %s22
      %p33 = scmp.ge.s32.totalorder %s32, 2
      %s34 = scalar_select %p33, 0, %s32
      %s35 = ssub.s32 %s22, %s34
      %s36 = ssub.s32 %s23, %s30
      %s37 = sor.u32 %s35, %s36
      %p38 = scmp.eq.s32.totalorder %s37, 0
      %s40 = sadd.s32 %s39, 1
      %s41 = scalar_select %p38, %s39, %s40
      %p44 = pneg %p38
      %p45 = scmp.eq.s32.totalorder %s15, 1
      %p46 = por %p44, %p45
      %p47 = scmp.ne.s32.totalorder %s39, %s42
      %p48 = scmp.eq.s32.totalorder %s15, 0
      %p49 = por %p47, %p48
      %p50 = scmp.ne.s32.totalorder %s39, %s42
      %p51 = scmp.eq.s32.totalorder %s20, 1
      %p52 = por %p50, %p51
      %p53 = scmp.ne.s32.totalorder %s42, %s43
      %p54 = scmp.eq.s32.totalorder %s20, 0
      %p55 = por %p53, %p54
      %p56 = scmp.ne.s32.totalorder %s42, %s43
      %p57 = scmp.eq.s32.totalorder %s21, 1
      %p58 = por %p56, %p57
      %p60 = scmp.ne.s32.totalorder %s43, %s59
      %p61 = scmp.eq.s32.totalorder %s21, 0
      %p62 = por %p60, %p61
      %s64 = sadd.s32 %s63, 1
      %p67 = scmp.eq.s32.totalorder %s15, 1
      %p68 = scmp.ne.s32.totalorder %s63, %s65
      %p69 = scmp.eq.s32.totalorder %s15, 0
      %p70 = por %p68, %p69
      %p71 = scmp.ne.s32.totalorder %s63, %s65
      %p72 = scmp.eq.s32.totalorder %s20, 1
      %p73 = por %p71, %p72
      %p74 = scmp.ne.s32.totalorder %s65, %s66
      %p75 = scmp.eq.s32.totalorder %s20, 0
      %p76 = por %p74, %p75
      %p77 = scmp.ne.s32.totalorder %s65, %s66
      %p78 = scmp.eq.s32.totalorder %s21, 1
      %p79 = por %p77, %p78
      %p81 = scmp.ne.s32.totalorder %s66, %s80
      %p82 = scmp.eq.s32.totalorder %s21, 0
      %p83 = por %p81, %p82
      %s85 = sadd.s32 %s84, 1
      %p88 = scmp.eq.s32.totalorder %s15, 1
      %p89 = scmp.ne.s32.totalorder %s84, %s86
      %p90 = scmp.eq.s32.totalorder %s15, 0
      %p91 = por %p89, %p90
      %p92 = scmp.ne.s32.totalorder %s84, %s86
      %p93 = scmp.eq.s32.totalorder %s20, 1
      %p94 = por %p92, %p93
      %p95 = scmp.ne.s32.totalorder %s86, %s87
      %p96 = scmp.eq.s32.totalorder %s20, 0
      %p97 = por %p95, %p96
      %p98 = scmp.ne.s32.totalorder %s86, %s87
      %p99 = scmp.eq.s32.totalorder %s21, 1
      %p100 = por %p98, %p99
      %p102 = scmp.ne.s32.totalorder %s87, %s101
      %p103 = scmp.eq.s32.totalorder %s21, 0
      %p104 = por %p102, %p103
      %s105 = ssub.s32 %s22, %s34
      %s106 = ssub.s32 %s23, %s30
      %s107 = sor.u32 %s105, %s106
      %p108 = scmp.eq.s32.totalorder %s107, 0
      %s110 = sadd.s32 %s109, 1
      %s111 = scalar_select %p108, %s109, %s110
      %p114 = pneg %p108
      %p115 = scmp.eq.s32.totalorder %s15, 1
      %p116 = por %p114, %p115
      %p117 = scmp.ne.s32.totalorder %s109, %s112
      %p118 = scmp.eq.s32.totalorder %s15, 0
      %p119 = por %p117, %p118
      %p120 = scmp.ne.s32.totalorder %s109, %s112
      %p121 = scmp.eq.s32.totalorder %s20, 1
      %p122 = por %p120, %p121
      %p123 = scmp.ne.s32.totalorder %s112, %s113
      %p124 = scmp.eq.s32.totalorder %s20, 0
      %p125 = por %p123, %p124
      %p126 = scmp.ne.s32.totalorder %s112, %s113
      %p127 = scmp.eq.s32.totalorder %s21, 1
      %p128 = por %p126, %p127
      %p130 = scmp.ne.s32.totalorder %s113, %s129
      %p131 = scmp.eq.s32.totalorder %s21, 0
      %p132 = por %p130, %p131
      %p133 = scmp.le.s32.totalorder 1, %s15
      %p134 = scmp.lt.s32.totalorder %s15, 3
      %p135 = pnand %p133, %p134
      %p136 = pneg %p135
      // Predicated region
      $region9: #{tpu_custom_call.1} parent=5 // pred_check
        _
      $region10: #{tpu_custom_call.1} parent=5 // pred_check_branch
        %138 = sbr.rel (%p135) target = $region12
      $region11: #{tpu_custom_call.1} parent=5 // pred_region
        %s139 = ssub.s32 %s15, 1
        // Predicated region
        $region13: #{tpu_custom_call.1} parent=11 // pred_check
          %p140 = pneg %p76
        $region14: #{tpu_custom_call.1} parent=11 // pred_check_branch
          %142 = sbr.rel (%p140) target = $region16
        $region15: #{tpu_custom_call.1} parent=11 // pred_region
          _
        $region16: #{tpu_custom_call.1} parent=11 // pred_fallthru
          _
        // Predicated region
        $region17: #{tpu_custom_call.1} parent=11 // pred_check
          %p143 = pneg %p97
        $region18: #{tpu_custom_call.1} parent=11 // pred_check_branch
          %145 = sbr.rel (%p143) target = $region20
        $region19: #{tpu_custom_call.1} parent=11 // pred_region
          _
        $region20: #{tpu_custom_call.1} parent=11 // pred_fallthru
          _
      $region12: #{tpu_custom_call.1} parent=5 // pred_fallthru
        _
      %p146 = scmp.lt.s32.totalorder %s15, 2
      // Predicated region
      $region21: #{tpu_custom_call.1} parent=5 // pred_check
        %p147 = pneg %p146
      $region22: #{tpu_custom_call.1} parent=5 // pred_check_branch
        %149 = sbr.rel (%p147) target = $region24
      $region23: #{tpu_custom_call.1} parent=5 // pred_region
        // Predicated region
        $region25: #{tpu_custom_call.1} parent=23 // pred_check
          %p150 = pneg %p49
        $region26: #{tpu_custom_call.1} parent=23 // pred_check_branch
          %152 = sbr.rel (%p150) target = $region28
        $region27: #{tpu_custom_call.1} parent=23 // pred_region
          %s153 = sand.u32 %s39, 1
          %s154 = scalar_lea.sflag [#allocation3], %s153
          %s155 = sand.u32 %s39, 1
          %s156 = smul.addr %s155, 16
          %s157 = scalar_lea.vmem [#allocation2], %s156
          %s158 = smul.u32 2, %s23
          %160 = vsyncadd %s154, 0
          %s161 = smul.addr %s22, 2
          %s162 = sadd.s32 %s158, %s161
          %s163 = smul.addr %s162, 8
          %s164 = scalar_lea.hbm %s0, %s163
          %s166 = sshll.u32 %s164, 4
          %s167 = int_to_ptr.hbm [resolvable:$true] %s166
          %s168 = sshll.u32 %s157, 4
          %s169 = int_to_ptr.vmem [resolvable:$true] %s168
          %171 = dma.hbm_to_vmem [thread:$0]  %s167, 256, %s169, %s154
        $region28: #{tpu_custom_call.1} parent=23 // pred_fallthru
          _
      $region24: #{tpu_custom_call.1} parent=5 // pred_fallthru
        _
      %p172 = scmp.le.s32.totalorder 1, %s15
      %p173 = scmp.lt.s32.totalorder %s15, 3
      %p174 = pnand %p172, %p173
      %p175 = pneg %p174
      // Predicated region
      $region29: #{tpu_custom_call.1} parent=5 // pred_check
        _
      $region30: #{tpu_custom_call.1} parent=5 // pred_check_branch
        %177 = sbr.rel (%p174) target = $region32
      $region31: #{tpu_custom_call.1} parent=5 // pred_region
        %s178 = ssub.s32 %s15, 1
        %s179 = sand.u32 %s42, 1
        %s180 = scalar_lea.sflag [#allocation3], %s179
        %s181 = sand.u32 %s42, 1
        %s182 = smul.addr %s181, 16
        %s183 = scalar_lea.vmem [#allocation2], %s182
        // Predicated region
        $region33: #{tpu_custom_call.1} parent=31 // pred_check
          %p184 = pneg %p55
        $region34: #{tpu_custom_call.1} parent=31 // pred_check_branch
          %186 = sbr.rel (%p184) target = $region36
        $region35: #{tpu_custom_call.1} parent=31 // pred_region
          %188 = dma.done %s180, 256
        $region36: #{tpu_custom_call.1} parent=31 // pred_fallthru
          _
        %s189 = sand.u32 %s42, 1
        %s190 = scalar_lea.sflag [#allocation3], %s189
        %s191 = sand.u32 %s42, 1
        %s192 = smul.addr %s191, 16
        %s193 = scalar_lea.vmem [#allocation2], %s192
        %p194 = pneg %p55
        %p195 = pneg %p52
        %p196 = pneg %p76
        %p197 = pneg %p73
        %p198 = pneg %p97
        %p199 = pneg %p94
        %p200 = pneg %p125
        %p201 = pneg %p122
        %s202 = sand.u32 %s112, 1
        %s203 = scalar_lea.sflag [#allocation4], %s202
        %s204 = sand.u32 %s112, 1
        %s205 = smul.addr %s204, 16
        %s206 = scalar_lea.vmem [#allocation5], %s205
        %s207 = smul.u32 2, %s25
        %s208 = smul.u32 2, %s25
        %v209 = vld [vmem:[%s183] sm:$0xff]
        %v210 = vld [vmem:[%s183 + $0x8] sm:$0xff]
        %v211 = vld [vmem:[%s1] sm:$0xff]
        %v212 = vld [vmem:[%s2] sm:$0xff]
        %214 = vset.pattern.permute.xlu0 0
        %215 = vperm.xlu0 %214, %v212
        %v216 = vpop.permute.xlu0 %215
        %vm218 = vcmask 64512
        %v220 = vsel %vm218, %v211, 0
        %222 = vmatpush.msra.mxu0 0.0
        %223 = vmatpush.msra.mxu0 0.0
        %224 = vmatpush.msra.mxu0 0.0
        %225 = vmatpush.msra.mxu0 0.0
        %226 = vmatpush.msra.mxu0 0.0
        %227 = vmatpush.msra.mxu0 0.0
        %228 = vmatpush.msra.mxu0 0.0
        %229 = vmatpush.msra.mxu0 0.0
        %230 = vmatpush.msra.mxu0 0.0
        %231 = vmatpush.msra.mxu0 0.0
        %232 = vmatpush.msra.mxu0 0.0
        %233 = vmatpush.msra.mxu0 0.0
        %234 = vmatpush.msra.mxu0 0.0
        %235 = vmatpush.msra.mxu0 0.0
        %236 = vmatpush.msra.mxu0 0.0
        %237 = vmatpush.msra.mxu0 %v209
        %238 = vmatmul.f32.gmra.mxu0 %v220
        %v239 = vpop.f32.mrf.mxu0
        %v240 = vadd.f32 %v216, %v239
        %241 = vdwg.mxu0
        %242 = vmatpush.msra.mxu0 0.0
        %243 = vmatpush.msra.mxu0 0.0
        %244 = vmatpush.msra.mxu0 0.0
        %245 = vmatpush.msra.mxu0 0.0
        %246 = vmatpush.msra.mxu0 0.0
        %247 = vmatpush.msra.mxu0 0.0
        %248 = vmatpush.msra.mxu0 0.0
        %249 = vmatpush.msra.mxu0 0.0
        %250 = vmatpush.msra.mxu0 0.0
        %251 = vmatpush.msra.mxu0 0.0
        %252 = vmatpush.msra.mxu0 0.0
        %253 = vmatpush.msra.mxu0 0.0
        %254 = vmatpush.msra.mxu0 0.0
        %255 = vmatpush.msra.mxu0 0.0
        %256 = vmatpush.msra.mxu0 0.0
        %257 = vmatpush.msra.mxu0 %v210
        %258 = vmatmul.f32.gmra.mxu0 %v220
        %v259 = vpop.f32.mrf.mxu0
        %v260 = vadd.f32 %v216, %v259
        %261 = vdwg.mxu0
        %262 = vst [vmem:[%s206] sm:$0xff] %v240
        %263 = vst [vmem:[%s206 + $0x8] sm:$0xff] %v260
        %s264 = sand.u32 %s112, 1
        %s265 = scalar_lea.sflag [#allocation4], %s264
        %s266 = sand.u32 %s112, 1
        %s267 = smul.addr %s266, 16
        %s268 = scalar_lea.vmem [#allocation5], %s267
        // Predicated region
        $region37: #{tpu_custom_call.1} parent=31 // pred_check
          %p269 = pneg %p122
        $region38: #{tpu_custom_call.1} parent=31 // pred_check_branch
          %271 = sbr.rel (%p269) target = $region40
        $region39: #{tpu_custom_call.1} parent=31 // pred_region
          %s272 = smul.u32 2, %s25
          %274 = vsyncadd %s265, 0
          %s275 = smul.addr %s24, 2
          %s276 = sadd.s32 %s272, %s275
          %s277 = smul.addr %s276, 8
          %s278 = scalar_lea.hbm %s3, %s277
          %s280 = sshll.u32 %s268, 4
          %s281 = int_to_ptr.vmem [resolvable:$true] %s280
          %s282 = sshll.u32 %s278, 4
          %s283 = int_to_ptr.hbm [resolvable:$true] %s282
          %285 = dma.vmem_to_hbm [thread:$0]  %s281, 256, %s283, %s265
        $region40: #{tpu_custom_call.1} parent=31 // pred_fallthru
          _
      $region32: #{tpu_custom_call.1} parent=5 // pred_fallthru
        _
      %p286 = scmp.le.s32.totalorder 2, %s15
      // Predicated region
      $region41: #{tpu_custom_call.1} parent=5 // pred_check
        %p287 = pneg %p286
      $region42: #{tpu_custom_call.1} parent=5 // pred_check_branch
        %289 = sbr.rel (%p287) target = $region44
      $region43: #{tpu_custom_call.1} parent=5 // pred_region
        %s290 = ssub.s32 %s15, 2
        // Predicated region
        $region45: #{tpu_custom_call.1} parent=43 // pred_check
          %p291 = pneg %p128
        $region46: #{tpu_custom_call.1} parent=43 // pred_check_branch
          %293 = sbr.rel (%p291) target = $region48
        $region47: #{tpu_custom_call.1} parent=43 // pred_region
          %s294 = sand.u32 %s113, 1
          %s295 = scalar_lea.sflag [#allocation4], %s294
          %s296 = sand.u32 %s113, 1
          %s297 = smul.addr %s296, 16
          %s298 = scalar_lea.vmem [#allocation5], %s297
          %300 = dma.done %s295, 256
        $region48: #{tpu_custom_call.1} parent=43 // pred_fallthru
          _
      $region44: #{tpu_custom_call.1} parent=5 // pred_fallthru
        _
    $region6: #{tpu_custom_call.1} parent=1 // loop_footer
      %s19 = sadd.s32 1, %s15
    $region7: #{tpu_custom_call.1} parent=1 // loop_footer_branch
      %14 = sbr.rel target = $region3
    $region8: #{tpu_custom_call.1} parent=1 // loop_exit
      _
    %301 = vsyncpa [#allocation3], 1
    %s302 = scalar_lea.sflag [#allocation3], 1
    %303 = vsyncpa %s302, 1
    %304 = vsyncpa [#allocation4], 1
    %s305 = scalar_lea.sflag [#allocation4], 1
    %306 = vsyncpa %s305, 1

</llo_original>
